<compile_context>
chip_gen: v6e
topology: v6e:2x2x1
jax: 0.10.0
libtpu: 0.0.40
codegen_flags: <defaults>
</compile_context>

<pallas_src>
import functools

import jax
import jax.numpy as jnp
from jax import lax
from jax.experimental import pallas as pl
from jax.experimental.pallas import tpu as pltpu


_PAD_E_SQ = 1e12  # padded classes: sq_dist ~ 1e12 -> logit ~ -1e6 -> exp == 0


def _round_up(x, m):
    return ((x + m - 1) // m) * m


def _euc_xentropy_kernel(pred_ref, embt_ref, e_sq_ref, tgt_ref, loss_ref,
                         p_sq_sc, m_sc, l_sc, picked_sc, *, tc):
    j = pl.program_id(1)

    # Per-B-tile init (first C step): hoisted ||p||^2 and online-softmax state.
    @pl.when(j == 0)
    def _():
        p = pred_ref[...].astype(jnp.float32)
        p_sq_sc[...] = jnp.sum(p * p, axis=-1, keepdims=True)
        m_sc[...] = jnp.full_like(m_sc, -jnp.inf)
        l_sc[...] = jnp.zeros_like(l_sc)
        picked_sc[...] = jnp.zeros_like(picked_sc)

    # (TB, D) x (D, TC) -> (TB, TC) on the MXU with f32 accumulation;
    # operands stay in their native (possibly bf16) dtype.
    cross = jnp.dot(pred_ref[...], embt_ref[...],
                    preferred_element_type=jnp.float32)              # (TB, TC)

    # ||p||^2 + ||e||^2 - 2 p.e  (||e||^2 arrives precomputed, lane-resident).
    sq_dist = jnp.maximum(p_sq_sc[...] + e_sq_ref[...] - 2.0 * cross, 0.0)
    neg = -jnp.sqrt(sq_dist)                                          # logits

    # Online (streaming) softmax over the class axis.
    m_prev = m_sc[...]
    m_new = jnp.maximum(m_prev, jnp.max(neg, axis=-1, keepdims=True))
    alpha = jnp.exp(m_prev - m_new)
    l_sc[...] = alpha * l_sc[...] + jnp.sum(jnp.exp(neg - m_new),
                                            axis=-1, keepdims=True)
    m_sc[...] = m_new

    # Target logit: masked accumulate within this C tile only.
    col = lax.broadcasted_iota(jnp.int32, neg.shape, 1) + j * tc
    hit = col == tgt_ref[...]                                         # (TB, TC)
    picked_sc[...] += jnp.sum(jnp.where(hit, neg, 0.0),
                              axis=-1, keepdims=True)

    @pl.when(j == pl.num_programs(1) - 1)
    def _():
        lse = m_sc[...] + jnp.log(l_sc[...])
        loss_ref[...] = lse - picked_sc[...]                          # (TB, 1)


def euc_xentropy_loss(pred_embs, target_idx, all_embs, *, tb=256, tc=512):
    """pred_embs: (B, D), target_idx: (B,) int, all_embs: (C, D) -> scalar f32."""
    B, D = pred_embs.shape
    C, D2 = all_embs.shape
    assert D == D2

    # Sublane-aligned B tiles; lane-dense C tiles (multiples of 128; the 512
    # default is also a multiple of 256 for the v6e/v7x MXU).
    tb_eff = min(tb, _round_up(B, 8))
    tc_eff = min(tc, _round_up(C, 128))
    b_pad = _round_up(B, tb_eff)
    c_pad = _round_up(C, tc_eff)

    # Keep native dtype in HBM (no forced f32 copy of the big operands).
    pred_p = jnp.pad(pred_embs, ((0, b_pad - B), (0, 0)))             # (B_pad, D)
    embt_p = jnp.pad(all_embs.T, ((0, 0), (0, c_pad - C)))            # (D, C_pad)
    # ||e||^2 computed once here (tiny f32 (1, C_pad) row); padded classes get a
    # huge squared norm so they contribute exactly 0 to the softmax.
    e_sq = jnp.sum(jnp.square(all_embs.astype(jnp.float32)), axis=-1)
    e_sq_p = jnp.pad(e_sq, (0, c_pad - C),
                     constant_values=_PAD_E_SQ).reshape(1, c_pad)
    tgt_p = jnp.pad(target_idx.astype(jnp.int32),
                    (0, b_pad - B)).reshape(b_pad, 1)

    nb = b_pad // tb_eff
    nc = c_pad // tc_eff

    kernel = functools.partial(_euc_xentropy_kernel, tc=tc_eff)

    per_row = pl.pallas_call(
        kernel,
        out_shape=jax.ShapeDtypeStruct((b_pad, 1), jnp.float32),
        grid_spec=pltpu.PrefetchScalarGridSpec(
            num_scalar_prefetch=0,
            grid=(nb, nc),
            in_specs=[
                pl.BlockSpec((tb_eff, D), lambda i, j: (i, 0)),   # pred    (TB, D)
                pl.BlockSpec((D, tc_eff), lambda i, j: (0, j)),   # emb^T   (D, TC)
                pl.BlockSpec((1, tc_eff), lambda i, j: (0, j)),   # ||e||^2 (1, TC)
                pl.BlockSpec((tb_eff, 1), lambda i, j: (i, 0)),   # target  (TB, 1)
            ],
            out_specs=pl.BlockSpec((tb_eff, 1), lambda i, j: (i, 0)),
            scratch_shapes=[pltpu.VMEM((tb_eff, 1), jnp.float32)] * 4,
        ),
        compiler_params=pltpu.CompilerParams(
            dimension_semantics=("parallel", "arbitrary"),
            vmem_limit_bytes=32 * 1024 * 1024,   # headroom on v7x's 64 MiB VMEM
        ),
    )(pred_p, embt_p, e_sq_p, tgt_p)

    return jnp.mean(per_row[:B, 0])


def _reference(pred_embs, target_idx, all_embs):
    # Pure-JAX mirror of the PyTorch module (pairwise L2 distance then
    # nn.CrossEntropyLoss on the negated distances, mean reduction).
    diff = pred_embs[:, None, :].astype(jnp.float32) - \
        all_embs[None, :, :].astype(jnp.float32)
    dist = jnp.sqrt(jnp.sum(diff * diff, axis=-1))
    logits = -dist
    lse = jax.nn.logsumexp(logits, axis=-1)
    picked = jnp.take_along_axis(logits, target_idx[:, None], axis=-1)[:, 0]
    return jnp.mean(lse - picked)


if __name__ == "__main__":
    key = jax.random.PRNGKey(0)

    # Case 1: tiny shapes matching the module's intent (B, D) / (C, D).
    k1, k2, k3 = jax.random.split(key, 3)
    B, D, C = 8, 32, 16
    pred = jax.random.normal(k1, (B, D), dtype=jnp.float32)
    embs = jax.random.normal(k2, (C, D), dtype=jnp.float32)
    tgt = jax.random.randint(k3, (B,), 0, C, dtype=jnp.int32)

    loss = euc_xentropy_loss(pred, tgt, embs)
    jax.block_until_ready(loss)
    ref = _reference(pred, tgt, embs)
    assert jnp.allclose(loss, ref, rtol=1e-4, atol=1e-4), (loss, ref)

    # Case 2: exercises padding + multiple C tiles (grid nc > 1).
    k4, k5, k6 = jax.random.split(jax.random.PRNGKey(1), 3)
    B2, D2, C2 = 40, 48, 600
    pred2 = jax.random.normal(k4, (B2, D2), dtype=jnp.float32)
    embs2 = jax.random.normal(k5, (C2, D2), dtype=jnp.float32)
    tgt2 = jax.random.randint(k6, (B2,), 0, C2, dtype=jnp.int32)

    loss2 = euc_xentropy_loss(pred2, tgt2, embs2)
    jax.block_until_ready(loss2)
    ref2 = _reference(pred2, tgt2, embs2)
    assert jnp.allclose(loss2, ref2, rtol=1e-4, atol=1e-4), (loss2, ref2)

    print("KERNEL_OK")
</pallas_src>

<mosaic_0001>
module attributes {stable_mosaic.version = 11 : i64} {
  func.func @_euc_xentropy_kernel(%arg0: i32, %arg1: i32, %arg2: memref<8x32xf32, #tpu.memory_space<vmem>>, %arg3: memref<32x128xf32, #tpu.memory_space<vmem>>, %arg4: memref<1x128xf32, #tpu.memory_space<vmem>>, %arg5: memref<8x1xi32, #tpu.memory_space<vmem>>, %arg6: memref<8x1xf32, #tpu.memory_space<vmem>>, %arg7: memref<8x1xf32, #tpu.memory_space<vmem>>, %arg8: memref<8x1xf32, #tpu.memory_space<vmem>>, %arg9: memref<8x1xf32, #tpu.memory_space<vmem>>, %arg10: memref<8x1xf32, #tpu.memory_space<vmem>>) attributes {dimension_semantics = [#tpu.dimension_semantics<parallel>, #tpu.dimension_semantics<arbitrary>], iteration_bounds = array<i64: 1, 1>, scalar_prefetch = 0 : i64, scratch_operands = 4 : i64, tpu.core_type = #tpu.core_type<tc>, window_params = [{transform_indices = @transform_0, window_bounds = array<i64: 8, 32>}, {transform_indices = @transform_1, window_bounds = array<i64: 32, 128>}, {transform_indices = @transform_2, window_bounds = array<i64: 1, 128>}, {transform_indices = @transform_3, window_bounds = array<i64: 8, 1>}, {transform_indices = @transform_4, window_bounds = array<i64: 8, 1>}]} {
    %c0_i32 = arith.constant 0 : i32
    %0 = arith.cmpi eq, %arg1, %c0_i32 : i32
    %1 = arith.extui %0 : i1 to i32
    %c0_i32_0 = arith.constant 0 : i32
    %2 = arith.cmpi ne, %1, %c0_i32_0 : i32
    scf.if %2 {
      %c0_31 = arith.constant 0 : index
      %c0_32 = arith.constant 0 : index
      %52 = vector.load %arg2[%c0_31, %c0_32] : memref<8x32xf32, #tpu.memory_space<vmem>>, vector<8x32xf32>
      %53 = arith.mulf %52, %52 : vector<8x32xf32>
      %cst_33 = arith.constant dense<0.000000e+00> : vector<8xf32>
      %54 = vector.multi_reduction <add>, %53, %cst_33 [1] : vector<8x32xf32> to vector<8xf32>
      %55 = vector.shape_cast %54 : vector<8xf32> to vector<8x1xf32>
      %c0_34 = arith.constant 0 : index
      %c0_35 = arith.constant 0 : index
      %56 = vector.load %arg7[%c0_34, %c0_35] : memref<8x1xf32, #tpu.memory_space<vmem>>, vector<8x1xf32>
      tpu.vector_store %arg7[%c0_34, %c0_35], %55 {strides = array<i32>} : memref<8x1xf32, #tpu.memory_space<vmem>>, vector<8x1xf32>,
      %cst_36 = arith.constant 0xFF800000 : f32
      %57 = vector.broadcast %cst_36 : f32 to vector<8x1xf32>
      %c0_37 = arith.constant 0 : index
      %c0_38 = arith.constant 0 : index
      %58 = vector.load %arg8[%c0_37, %c0_38] : memref<8x1xf32, #tpu.memory_space<vmem>>, vector<8x1xf32>
      tpu.vector_store %arg8[%c0_37, %c0_38], %57 {strides = array<i32>} : memref<8x1xf32, #tpu.memory_space<vmem>>, vector<8x1xf32>,
      %cst_39 = arith.constant 0.000000e+00 : f32
      %59 = vector.broadcast %cst_39 : f32 to vector<8x1xf32>
      %c0_40 = arith.constant 0 : index
      %c0_41 = arith.constant 0 : index
      %60 = vector.load %arg9[%c0_40, %c0_41] : memref<8x1xf32, #tpu.memory_space<vmem>>, vector<8x1xf32>
      tpu.vector_store %arg9[%c0_40, %c0_41], %59 {strides = array<i32>} : memref<8x1xf32, #tpu.memory_space<vmem>>, vector<8x1xf32>,
      %cst_42 = arith.constant 0.000000e+00 : f32
      %61 = vector.broadcast %cst_42 : f32 to vector<8x1xf32>
      %c0_43 = arith.constant 0 : index
      %c0_44 = arith.constant 0 : index
      %62 = vector.load %arg10[%c0_43, %c0_44] : memref<8x1xf32, #tpu.memory_space<vmem>>, vector<8x1xf32>
      tpu.vector_store %arg10[%c0_43, %c0_44], %61 {strides = array<i32>} : memref<8x1xf32, #tpu.memory_space<vmem>>, vector<8x1xf32>,
    } else {
    }
    %c0 = arith.constant 0 : index
    %c0_1 = arith.constant 0 : index
    %3 = vector.load %arg2[%c0, %c0_1] : memref<8x32xf32, #tpu.memory_space<vmem>>, vector<8x32xf32>
    %c0_2 = arith.constant 0 : index
    %c0_3 = arith.constant 0 : index
    %4 = vector.load %arg3[%c0_2, %c0_3] : memref<32x128xf32, #tpu.memory_space<vmem>>, vector<32x128xf32>
    %cst = arith.constant dense<0.000000e+00> : vector<8x128xf32>
    %5 = tpu.matmul %3, %4, %cst {dimension_numbers = #tpu.dot_dimension_numbers<[1], [0], [0], [1], [0, 0, 1, 1], [], []>} : vector<8x32xf32>, vector<32x128xf32>, vector<8x128xf32> -> vector<8x128xf32>
    %c0_4 = arith.constant 0 : index
    %c0_5 = arith.constant 0 : index
    %6 = vector.load %arg7[%c0_4, %c0_5] : memref<8x1xf32, #tpu.memory_space<vmem>>, vector<8x1xf32>
    %c0_6 = arith.constant 0 : index
    %c0_7 = arith.constant 0 : index
    %7 = vector.load %arg4[%c0_6, %c0_7] : memref<1x128xf32, #tpu.memory_space<vmem>>, vector<1x128xf32>
    %8 = vector.broadcast %6 : vector<8x1xf32> to vector<8x128xf32>
    %9 = vector.broadcast %7 : vector<1x128xf32> to vector<8x128xf32>
    %10 = arith.addf %8, %9 : vector<8x128xf32>
    %cst_8 = arith.constant 2.000000e+00 : f32
    %11 = vector.broadcast %cst_8 : f32 to vector<8x128xf32>
    %12 = arith.mulf %11, %5 : vector<8x128xf32>
    %13 = arith.subf %10, %12 : vector<8x128xf32>
    %cst_9 = arith.constant 0.000000e+00 : f32
    %14 = vector.broadcast %cst_9 : f32 to vector<8x128xf32>
    %15 = arith.maximumf %13, %14 : vector<8x128xf32>
    %16 = math.sqrt %15 : vector<8x128xf32>
    %cst_10 = arith.constant 0.000000e+00 : f32
    %17 = vector.broadcast %cst_10 : f32 to vector<8x128xf32>
    %18 = arith.subf %17, %16 : vector<8x128xf32>
    %c0_11 = arith.constant 0 : index
    %c0_12 = arith.constant 0 : index
    %19 = vector.load %arg8[%c0_11, %c0_12] : memref<8x1xf32, #tpu.memory_space<vmem>>, vector<8x1xf32>
    %cst_13 = arith.constant dense<0xFF800000> : vector<8xf32>
    %20 = vector.multi_reduction <maximumf>, %18, %cst_13 [1] : vector<8x128xf32> to vector<8xf32>
    %21 = vector.shape_cast %20 : vector<8xf32> to vector<8x1xf32>
    %22 = arith.maximumf %19, %21 : vector<8x1xf32>
    %23 = arith.subf %19, %22 : vector<8x1xf32>
    %24 = math.exp %23 : vector<8x1xf32>
    %c0_14 = arith.constant 0 : index
    %c0_15 = arith.constant 0 : index
    %25 = vector.load %arg9[%c0_14, %c0_15] : memref<8x1xf32, #tpu.memory_space<vmem>>, vector<8x1xf32>
    %26 = arith.mulf %24, %25 : vector<8x1xf32>
    %27 = vector.broadcast %22 : vector<8x1xf32> to vector<8x128xf32>
    %28 = arith.subf %18, %27 : vector<8x128xf32>
    %29 = math.exp %28 : vector<8x128xf32>
    %cst_16 = arith.constant dense<0.000000e+00> : vector<8xf32>
    %30 = vector.multi_reduction <add>, %29, %cst_16 [1] : vector<8x128xf32> to vector<8xf32>
    %31 = vector.shape_cast %30 : vector<8xf32> to vector<8x1xf32>
    %32 = arith.addf %26, %31 : vector<8x1xf32>
    %c0_17 = arith.constant 0 : index
    %c0_18 = arith.constant 0 : index
    %33 = vector.load %arg9[%c0_17, %c0_18] : memref<8x1xf32, #tpu.memory_space<vmem>>, vector<8x1xf32>
    tpu.vector_store %arg9[%c0_17, %c0_18], %32 {strides = array<i32>} : memref<8x1xf32, #tpu.memory_space<vmem>>, vector<8x1xf32>,
    %c0_19 = arith.constant 0 : index
    %c0_20 = arith.constant 0 : index
    %34 = vector.load %arg8[%c0_19, %c0_20] : memref<8x1xf32, #tpu.memory_space<vmem>>, vector<8x1xf32>
    tpu.vector_store %arg8[%c0_19, %c0_20], %22 {strides = array<i32>} : memref<8x1xf32, #tpu.memory_space<vmem>>, vector<8x1xf32>,
    %35 = tpu.iota {dimensions = array<i32: 1>} : vector<8x128xi32>
    %c128_i32 = arith.constant 128 : i32
    %36 = arith.muli %arg1, %c128_i32 : i32
    %37 = vector.broadcast %36 : i32 to vector<8x128xi32>
    %38 = arith.addi %35, %37 : vector<8x128xi32>
    %c0_21 = arith.constant 0 : index
    %c0_22 = arith.constant 0 : index
    %39 = vector.load %arg5[%c0_21, %c0_22] : memref<8x1xi32, #tpu.memory_space<vmem>>, vector<8x1xi32>
    %40 = vector.broadcast %39 : vector<8x1xi32> to vector<8x128xi32>
    %41 = arith.cmpi eq, %38, %40 : vector<8x128xi32>
    %c0_23 = arith.constant 0 : index
    %c0_24 = arith.constant 0 : index
    %42 = vector.load %arg10[%c0_23, %c0_24] : memref<8x1xf32, #tpu.memory_space<vmem>>, vector<8x1xf32>
    %cst_25 = arith.constant 0.000000e+00 : f32
    %43 = vector.broadcast %cst_25 : f32 to vector<8x128xf32>
    %44 = arith.select %41, %18, %43 : vector<8x128xi1>, vector<8x128xf32>
    %cst_26 = arith.constant dense<0.000000e+00> : vector<8xf32>
    %45 = vector.multi_reduction <add>, %44, %cst_26 [1] : vector<8x128xf32> to vector<8xf32>
    %46 = vector.shape_cast %45 : vector<8xf32> to vector<8x1xf32>
    %47 = arith.addf %42, %46 : vector<8x1xf32>
    %c0_27 = arith.constant 0 : index
    %c0_28 = arith.constant 0 : index
    %48 = vector.load %arg10[%c0_27, %c0_28] : memref<8x1xf32, #tpu.memory_space<vmem>>, vector<8x1xf32>
    tpu.vector_store %arg10[%c0_27, %c0_28], %47 {strides = array<i32>} : memref<8x1xf32, #tpu.memory_space<vmem>>, vector<8x1xf32>,
    %c0_i32_29 = arith.constant 0 : i32
    %49 = arith.cmpi eq, %arg1, %c0_i32_29 : i32
    %50 = arith.extui %49 : i1 to i32
    %c0_i32_30 = arith.constant 0 : i32
    %51 = arith.cmpi ne, %50, %c0_i32_30 : i32
    scf.if %51 {
      %c0_31 = arith.constant 0 : index
      %c0_32 = arith.constant 0 : index
      %52 = vector.load %arg8[%c0_31, %c0_32] : memref<8x1xf32, #tpu.memory_space<vmem>>, vector<8x1xf32>
      %c0_33 = arith.constant 0 : index
      %c0_34 = arith.constant 0 : index
      %53 = vector.load %arg9[%c0_33, %c0_34] : memref<8x1xf32, #tpu.memory_space<vmem>>, vector<8x1xf32>
      %54 = math.log %53 : vector<8x1xf32>
      %55 = arith.addf %52, %54 : vector<8x1xf32>
      %c0_35 = arith.constant 0 : index
      %c0_36 = arith.constant 0 : index
      %56 = vector.load %arg10[%c0_35, %c0_36] : memref<8x1xf32, #tpu.memory_space<vmem>>, vector<8x1xf32>
      %57 = arith.subf %55, %56 : vector<8x1xf32>
      %c0_37 = arith.constant 0 : index
      %c0_38 = arith.constant 0 : index
      %58 = vector.load %arg6[%c0_37, %c0_38] : memref<8x1xf32, #tpu.memory_space<vmem>>, vector<8x1xf32>
      tpu.vector_store %arg6[%c0_37, %c0_38], %57 {strides = array<i32>} : memref<8x1xf32, #tpu.memory_space<vmem>>, vector<8x1xf32>,
    } else {
    }
    return
  }
  func.func @transform_0(%arg0: i32, %arg1: i32) -> (i32, i32) {
    %c0_i32 = arith.constant 0 : i32
    %c0_i32_0 = arith.constant 0 : i32
    return %arg0, %c0_i32 : i32, i32
  }
  func.func @transform_1(%arg0: i32, %arg1: i32) -> (i32, i32) {
    %c0_i32 = arith.constant 0 : i32
    %c0_i32_0 = arith.constant 0 : i32
    return %c0_i32, %arg1 : i32, i32
  }
  func.func @transform_2(%arg0: i32, %arg1: i32) -> (i32, i32) {
    %c0_i32 = arith.constant 0 : i32
    %c0_i32_0 = arith.constant 0 : i32
    return %c0_i32, %arg1 : i32, i32
  }
  func.func @transform_3(%arg0: i32, %arg1: i32) -> (i32, i32) {
    %c0_i32 = arith.constant 0 : i32
    %c0_i32_0 = arith.constant 0 : i32
    return %arg0, %c0_i32 : i32, i32
  }
  func.func @transform_4(%arg0: i32, %arg1: i32) -> (i32, i32) {
    %c0_i32 = arith.constant 0 : i32
    %c0_i32_0 = arith.constant 0 : i32
    return %arg0, %c0_i32 : i32, i32
  }
}

</mosaic_0001>

<llo_original>
// kernel: tpu_custom_call.1
$region0: #{tpu_custom_call.1}
  #allocation0 [shape = 'u32[]', space=smem, size = 0x4, offset = 0x4, fixed_abs, tag = 'smem constant byte address 0x4 - core index']
  #allocation1 [shape = 'u32[144,128]{1,0:T(1,128)}', space=vmem, size = 0x12000, scoped, tag = 'internal scratch']
  #allocation2 [shape = 'f32[8,1]{1,0:T(8,128)}', space=vmem, size = 0x1000, scoped, tag = 'scratch operand']
  #allocation3 [shape = 'f32[8,1]{1,0:T(8,128)}', space=vmem, size = 0x1000, scoped, tag = 'scratch operand']
  #allocation4 [shape = 'f32[8,1]{1,0:T(8,128)}', space=vmem, size = 0x1000, scoped, tag = 'scratch operand']
  #allocation5 [shape = 'f32[8,1]{1,0:T(8,128)}', space=vmem, size = 0x1000, scoped, tag = 'scratch operand']
  %s0 = inlined_call_operand.vmem [shape: f32[8,32], index: 0, kind: input, shape index: {}]
  %s1 = inlined_call_operand.hbm [shape: f32[32,128], index: 1, kind: input, shape index: {}]
  %s2 = inlined_call_operand.vmem [shape: f32[1,128], index: 2, kind: input, shape index: {}]
  %s3 = inlined_call_operand.vmem [shape: s32[8,1], index: 3, kind: input, shape index: {}]
  %s4 = inlined_call_operand.vmem [shape: f32[8,1], index: 4, kind: output, shape index: {}]
  %s5 = sld [smem:[#allocation0]]
  $region38: #{tpu_custom_call.1} parent=0
    _
  %s7 = ssub.s32 1, %s5
  %s8 = scalar_select 0, %s7, %s5
  $region1: #{tpu_custom_call.1} parent=0
    #allocation6 [shape = 'u8[16384]{0}', space=vmem, size = 0x4000, scoped, tag = 'input window, operand 1, single buffered']
    #allocation7 [shape = 's32[1]{0}', space=sflag, size = 0x4, scoped, tag = 'scoped memory for tpu_custom_call.1']
    %9 = vsyncpa [#allocation7], 0
    // Predicated region
    $region2: #{tpu_custom_call.1} parent=1 // pred_check
      _
    $region3: #{tpu_custom_call.1} parent=1 // pred_check_branch
      %11 = sbr.rel (0) target = $region5
    $region4: #{tpu_custom_call.1} parent=1 // pred_region
      _
    $region5: #{tpu_custom_call.1} parent=1 // pred_fallthru
      _
    // Predicated region
    $region6: #{tpu_custom_call.1} parent=1 // pred_check
      _
    $region7: #{tpu_custom_call.1} parent=1 // pred_check_branch
      %13 = sbr.rel (0) target = $region9
    $region8: #{tpu_custom_call.1} parent=1 // pred_region
      %s15 = ssub.s32 512, 512
      %16 = vsyncadd [#allocation7], %s15
      %s17 = sshll.u32 [#allocation6], 4
      %s18 = int_to_ptr.vmem [resolvable:$true] %s17
      %23 = dma.hbm_to_vmem [thread:$0]  %s1, 512, %s18, [#allocation7], 128, 128, 8
    $region9: #{tpu_custom_call.1} parent=1 // pred_fallthru
      _
    // Predicated region
    $region10: #{tpu_custom_call.1} parent=1 // pred_check
      _
    $region11: #{tpu_custom_call.1} parent=1 // pred_check_branch
      %25 = sbr.rel (0) target = $region13
    $region12: #{tpu_custom_call.1} parent=1 // pred_region
      _
    $region13: #{tpu_custom_call.1} parent=1 // pred_fallthru
      _
    // Predicated region
    $region14: #{tpu_custom_call.1} parent=1 // pred_check
      _
    $region15: #{tpu_custom_call.1} parent=1 // pred_check_branch
      %27 = sbr.rel (0) target = $region17
    $region16: #{tpu_custom_call.1} parent=1 // pred_region
      _
    $region17: #{tpu_custom_call.1} parent=1 // pred_fallthru
      _
    // Predicated region
    $region18: #{tpu_custom_call.1} parent=1 // pred_check
      _
    $region19: #{tpu_custom_call.1} parent=1 // pred_check_branch
      %29 = sbr.rel (0) target = $region21
    $region20: #{tpu_custom_call.1} parent=1 // pred_region
      %30 = dma.done [#allocation7], 512
    $region21: #{tpu_custom_call.1} parent=1 // pred_fallthru
      _
    %p31 = scmp.eq.s32.totalorder 0, 0
    // Predicated region
    $region22: #{tpu_custom_call.1} parent=1 // pred_check
      %p32 = pneg %p31
    $region23: #{tpu_custom_call.1} parent=1 // pred_check_branch
      %34 = sbr.rel (%p32) target = $region25
    $region24: #{tpu_custom_call.1} parent=1 // pred_region
      %v35 = vld [vmem:[%s0] sm:$0xff]
      %v36 = vmul.f32 %v35, %v35
      %vm37 = vcmask 261120
      %v38 = vsel %vm37, %v36, 0.0
      %39 = vadd.xlane.f32.xlu0 %v38
      %v40 = vpop.xlane.xlu0 %39
      %vm41 = vcmask 7168
      %42 = vst.msk [vmem:[#allocation2] sm:$0xff] %vm41, %v40
      %43 = vst.msk [vmem:[#allocation3] sm:$0xff] %vm41, -inf
      %44 = vst.msk [vmem:[#allocation4] sm:$0xff] %vm41, 0.0
      %45 = vst.msk [vmem:[#allocation5] sm:$0xff] %vm41, 0.0
    $region25: #{tpu_custom_call.1} parent=1 // pred_fallthru
      _
    %v46 = vld [vmem:[%s0] sm:$0xff]
    %v47 = vld [vmem:[#allocation6] sm:$0xff]
    %v48 = vld [vmem:[#allocation6 + $0x8] sm:$0xff]
    %v49 = vld [vmem:[#allocation6 + $0x10] sm:$0xff]
    %v50 = vld [vmem:[#allocation6 + $0x18] sm:$0xff]
    %vm51 = vcmask 261120
    %v53 = vsel %vm51, %v46, 0
    %55 = vmatprep.subr.mxu0 0.0
    %56 = vmatpush1.msra.mxu0 0.0
    %57 = vmatprep.subr.mxu0 0.0
    %58 = vmatpush1.msra.mxu0 0.0
    %59 = vmatprep.subr.mxu0 0.0
    %60 = vmatpush1.msra.mxu0 0.0
    %61 = vmatprep.subr.mxu0 0.0
    %62 = vmatpush1.msra.mxu0 0.0
    %63 = vmatprep.subr.mxu0 0.0
    %64 = vmatpush1.msra.mxu0 0.0
    %65 = vmatprep.subr.mxu0 0.0
    %66 = vmatpush1.msra.mxu0 0.0
    %67 = vmatprep.subr.mxu0 0.0
    %68 = vmatpush1.msra.mxu0 0.0
    %69 = vmatprep.subr.mxu0 0.0
    %70 = vmatpush1.msra.mxu0 0.0
    %71 = vmatprep.subr.mxu0 0.0
    %72 = vmatpush1.msra.mxu0 0.0
    %73 = vmatprep.subr.mxu0 0.0
    %74 = vmatpush1.msra.mxu0 0.0
    %75 = vmatprep.subr.mxu0 0.0
    %76 = vmatpush1.msra.mxu0 0.0
    %77 = vmatprep.subr.mxu0 0.0
    %78 = vmatpush1.msra.mxu0 0.0
    %79 = vmatprep.subr.mxu0 0.0
    %80 = vmatpush1.msra.mxu0 %v50
    %81 = vmatprep.subr.mxu0 0.0
    %82 = vmatpush1.msra.mxu0 %v49
    %83 = vmatprep.subr.mxu0 0.0
    %84 = vmatpush1.msra.mxu0 %v48
    %85 = vmatprep.subr.mxu0 0.0
    %86 = vmatpush1.msra.mxu0 %v47
    %87 = vmatprep.subr.mxu0 0.0
    %88 = vmatpush2.msra.mxu0 0.0
    %89 = vmatprep.subr.mxu0 0.0
    %90 = vmatpush2.msra.mxu0 0.0
    %91 = vmatprep.subr.mxu0 0.0
    %92 = vmatpush2.msra.mxu0 0.0
    %93 = vmatprep.subr.mxu0 0.0
    %94 = vmatpush2.msra.mxu0 0.0
    %95 = vmatprep.subr.mxu0 0.0
    %96 = vmatpush2.msra.mxu0 0.0
    %97 = vmatprep.subr.mxu0 0.0
    %98 = vmatpush2.msra.mxu0 0.0
    %99 = vmatprep.subr.mxu0 0.0
    %100 = vmatpush2.msra.mxu0 0.0
    %101 = vmatprep.subr.mxu0 0.0
    %102 = vmatpush2.msra.mxu0 0.0
    %103 = vmatprep.subr.mxu0 0.0
    %104 = vmatpush2.msra.mxu0 0.0
    %105 = vmatprep.subr.mxu0 0.0
    %106 = vmatpush2.msra.mxu0 0.0
    %107 = vmatprep.subr.mxu0 0.0
    %108 = vmatpush2.msra.mxu0 0.0
    %109 = vmatprep.subr.mxu0 0.0
    %110 = vmatpush2.msra.mxu0 0.0
    %111 = vmatprep.subr.mxu0 0.0
    %112 = vmatpush2.msra.mxu0 0.0
    %113 = vmatprep.subr.mxu0 0.0
    %114 = vmatpush2.msra.mxu0 0.0
    %115 = vmatprep.subr.mxu0 0.0
    %116 = vmatpush2.msra.mxu0 0.0
    %117 = vmatprep.subr.mxu0 0.0
    %118 = vmatpush2.msra.mxu0 0.0
    %119 = vmatprep.mubr.f32.mxu0 0.0
    %120 = vmatmul.mubr.f32.gmra.mxu0 %v53
    %v121 = vpop.f32.mrf.mxu0
    %v122 = vadd.f32 0.0, %v121
    %v123 = vpop.f32.mrf.mxu0
    %124 = vdwg.mxu0
    %v125 = vld [vmem:[#allocation2] sm:$0xff]
    %v126 = vld [vmem:[%s2] sm:$0x1]
    %128 = vset.pattern.permute.xlu0 0
    %129 = vperm.xlu0 %128, %v125
    %v130 = vpop.permute.xlu0 %129
    %v133 = vlaneseq
    %v134 = vshrl.u32 %v133, 7
    %v135 = vsub.s32 0, %v134
    %v136 = vrot.slane %v126, %v135
    %v138 = vadd.f32 %v130, %v136
    %v139 = vmul.f32 %v122, 2.0
    %v140 = vsub.f32 %v138, %v139
    %v141 = vmax.f32 %v140, 0.0
    %v142 = vrsqrt.pop %v141
    %v143 = vmul.f32 %v141, %v142
    %vm144 = vcmp.eq.f32.partialorder %v141, inf
    %v145 = vsel %vm144, %v141, %v143
    %vm146 = vcmp.eq.f32.partialorder %v141, 0.0
    %v147 = vand.u32 %v141, 2147483648
    %v148 = vsel %vm146, %v147, %v145
    %v149 = vsub.f32 0.0, %v148
    %v150 = vld [vmem:[#allocation3] sm:$0xff]
    %151 = vmax.xlane.f32.xlu0 %v149
    %v152 = vpop.xlane.xlu0 %151
    %v153 = vmax.f32 %v150, %v152
    %v154 = vsub.f32 %v150, %v153
    %v155 = vmul.f32 %v154, 1.442695
    %v156 = vpow.pop %v155
    %v157 = vld [vmem:[#allocation4] sm:$0xff]
    %v158 = vmul.f32 %v156, %v157
    %160 = vset.pattern.permute.xlu0 0
    %161 = vperm.xlu0 %160, %v153
    %v162 = vpop.permute.xlu0 %161
    %v164 = vsub.f32 %v149, %v162
    %v165 = vmul.f32 %v164, 1.442695
    %v166 = vpow.pop %v165
    %167 = vadd.xlane.f32.xlu0 %v166
    %v168 = vpop.xlane.xlu0 %167
    %v169 = vadd.f32 %v158, %v168
    %vm170 = vcmask 7168
    %171 = vst.msk [vmem:[#allocation4] sm:$0xff] %vm170, %v169
    %172 = vst.msk [vmem:[#allocation3] sm:$0xff] %vm170, %v153
    %v173 = vlaneseq
    %v174 = vand.u32 %v173, 127
    %s175 = smul.u32 0, 128
    %v176 = vstv %s175
    %v177 = vadd.s32 %v174, %v176
    %v178 = vld [vmem:[%s3] sm:$0xff]
    %179 = vset.pattern.permute.xlu0 0
    %180 = vperm.xlu0 %179, %v178
    %v181 = vpop.permute.xlu0 %180
    %vm182 = vcmp.eq.s32.totalorder %v177, %v181
    %v183 = vld [vmem:[#allocation5] sm:$0xff]
    %v184 = vsel %vm182, %v149, 0.0
    %185 = vadd.xlane.f32.xlu0 %v184
    %v186 = vpop.xlane.xlu0 %185
    %v187 = vadd.f32 %v183, %v186
    %188 = vst.msk [vmem:[#allocation5] sm:$0xff] %vm170, %v187
    // Predicated region
    $region26: #{tpu_custom_call.1} parent=1 // pred_check
      %p189 = pneg %p31
    $region27: #{tpu_custom_call.1} parent=1 // pred_check_branch
      %191 = sbr.rel (%p189) target = $region29
    $region28: #{tpu_custom_call.1} parent=1 // pred_region
      %v192 = vld [vmem:[#allocation3] sm:$0xff]
      %v193 = vld [vmem:[#allocation4] sm:$0xff]
      %v194 = vlog2.pop %v193
      %v195 = vmul.f32 %v194, 0.6931472
      %v196 = vadd.f32 %v192, %v195
      %v197 = vld [vmem:[#allocation5] sm:$0xff]
      %v198 = vsub.f32 %v196, %v197
      %199 = vst.msk [vmem:[%s4] sm:$0xff] %vm170, %v198
    $region29: #{tpu_custom_call.1} parent=1 // pred_fallthru
      _
    // Predicated region
    $region30: #{tpu_custom_call.1} parent=1 // pred_check
      _
    $region31: #{tpu_custom_call.1} parent=1 // pred_check_branch
      %201 = sbr.rel (0) target = $region33
    $region32: #{tpu_custom_call.1} parent=1 // pred_region
      _
    $region33: #{tpu_custom_call.1} parent=1 // pred_fallthru
      _
    // Predicated region
    $region34: #{tpu_custom_call.1} parent=1 // pred_check
      _
    $region35: #{tpu_custom_call.1} parent=1 // pred_check_branch
      %203 = sbr.rel (0) target = $region37
    $region36: #{tpu_custom_call.1} parent=1 // pred_region
      _
    $region37: #{tpu_custom_call.1} parent=1 // pred_fallthru
      _
    %204 = vsyncpa [#allocation7], 1

</llo_original>
